<compile_context>
chip_gen: v6e
topology: v6e:2x2x1
jax: 0.10.0
libtpu: 0.0.40
codegen_flags: <defaults>
</compile_context>

<pallas_src>
import math

import jax
import jax.numpy as jnp
from jax.experimental import pallas as pl
from jax.experimental.pallas import tpu as pltpu

FILTER_SIZE = 5          # module default
STRIDE = 2               # module default

_KRON_MATRIX_BUDGET = 2 << 20     # use the fused single-matmul path below this
_LANE = 128
_SUBLANE = 8


# ----------------------------- small helpers --------------------------------

def _round_up(a, b):
    return ((a + b - 1) // b) * b


def _hann_taps(filter_size=FILTER_SIZE):
    """1-D separable factor of the module filter: hanning(fs)[1:-1]/sum -> [.25,.5,.25]."""
    n = jnp.arange(filter_size, dtype=jnp.float32)
    h = 0.5 - 0.5 * jnp.cos(2.0 * jnp.pi * n / (filter_size - 1))   # np.hanning
    a = h[1:-1]
    return a / jnp.sum(a)


def _conv_matrix(l_in, l_out, taps, stride, pad):
    """Dense (l_in, l_out) matrix of the 1-D strided conv with zero padding folded in."""
    k = taps.shape[0]
    i_in = jnp.arange(l_in)[:, None]
    i_out = jnp.arange(l_out)[None, :]
    t = i_in - stride * i_out + pad
    valid = (t >= 0) & (t < k)
    return jnp.where(valid, taps[jnp.clip(t, 0, k - 1)], 0.0).astype(jnp.float32)


def _vmem_capacity_bytes():
    """Per-core VMEM capacity; conservative fallback if the query is unavailable."""
    try:
        return int(pltpu.get_tpu_info().vmem_capacity_bytes)
    except Exception:
        return 64 << 20          # v7x per-TensorCore VMEM (smallest generation)


def _input_block_budget(vmem_cap):
    # Multi-MiB blocks reach ~85% of the HBM roofline; keep 2x(in)+2x(out)+temps
    # comfortably inside the per-generation VMEM (64 MiB on v7x, 128 MiB v5e/v6e).
    return max(1 << 20, min(12 << 20, vmem_cap // 10))


def _pick_tp_kron(planes, plane_row_bytes, vmem_cap):
    """Planes per block for the kron path (plane axis is the second-minor block dim)."""
    budget = _input_block_budget(vmem_cap)
    tp = max(1, min(planes, budget // max(plane_row_bytes, 1)))
    # Keep >= 2 grid steps when the plane count allows it (v7x has 2 TensorCores).
    if planes > _SUBLANE:
        half = max(_SUBLANE, _SUBLANE * ((planes // 2) // _SUBLANE))
        tp = min(tp, half)
    if tp >= planes:
        return planes
    # Second-minor block dim must be a multiple of 8 (or span the full array).
    return max(_SUBLANE, _SUBLANE * (tp // _SUBLANE))


def _pick_tp_sep(planes, h, ho, plane_bytes, vmem_cap):
    """Planes per block for the separable path (block rows are tp*H / tp*Ho)."""
    budget = _input_block_budget(vmem_cap)
    tp = max(1, min(planes, budget // max(plane_bytes, 1)))
    # (tp*H) and (tp*Ho) are second-minor block dims: keep them multiples of 8
    # unless the block spans every plane.
    l_h = _SUBLANE // math.gcd(h, _SUBLANE)
    l_o = _SUBLANE // math.gcd(ho, _SUBLANE)
    step = l_h * l_o // math.gcd(l_h, l_o)
    # Keep >= 2 grid steps when possible (v7x megacore).
    if planes > step:
        half = max(step, step * ((planes // 2) // step))
        tp = min(tp, half)
    if tp >= planes:
        return planes
    return max(step, step * (tp // step))


# ------------------------------- kernels -------------------------------------

def _l2pool_kron_kernel(x_ref, m_ref, o_ref):
    # x_ref: (TP, H*W)   one plane per (lane-dense) row
    # m_ref: (H*W, Ho*Wo) Kronecker conv matrix (shared by every plane)
    # o_ref: (TP, Ho*Wo)
    x = x_ref[...].astype(jnp.float32)
    out = jnp.dot(x * x, m_ref[...], preferred_element_type=jnp.float32)
    o_ref[...] = jnp.sqrt(out + 1e-12).astype(o_ref.dtype)


def _l2pool_sep_kernel(x_ref, mw_ref, mh_ref, o_ref, t_ref):
    # x_ref : (TP*H, W)   TP planes stacked along sublanes
    # mw_ref: (W, Wo)     horizontal Hann taps + stride-2 + zero-pad
    # mh_ref: (Ho, H)     vertical   Hann taps + stride-2 + zero-pad
    # o_ref : (TP*Ho, Wo)
    # t_ref : (TP*H, Wo)  VMEM scratch for the horizontal-pass intermediate
    h = mh_ref.shape[1]
    ho = mh_ref.shape[0]
    tp = t_ref.shape[0] // h

    # Horizontal pass: ONE fused matmul over every plane in the block
    # (replaces the old per-plane Python unroll -> no vreg spill risk, and the
    # MXU pipeline stays full instead of many small push/drain sequences).
    x = x_ref[...].astype(jnp.float32)
    t_ref[...] = jnp.dot(x * x, mw_ref[...], preferred_element_type=jnp.float32)

    mh = mh_ref[...]

    def _aligned(start, rows):
        return pl.multiple_of(start, _SUBLANE) if rows % _SUBLANE == 0 else start

    # Vertical pass: fori_loop bounds live ranges to a single plane per step.
    def body(p, carry):
        r0 = _aligned(p * h, h)
        o0 = _aligned(p * ho, ho)
        out = jnp.dot(mh, t_ref[pl.ds(r0, h), :],
                      preferred_element_type=jnp.float32)
        o_ref[pl.ds(o0, ho), :] = jnp.sqrt(out + 1e-12).astype(o_ref.dtype)
        return carry

    jax.lax.fori_loop(0, tp, body, 0)


# ------------------------------- wrapper --------------------------------------

def l2pooling(x_nchw, filter_size=FILTER_SIZE, stride=STRIDE, force_separable=False):
    """Pallas forward of the PyTorch L2pooling module.  NCHW in -> NCHW out."""
    n, c, h, w = x_nchw.shape
    pad = (filter_size - 2) // 2
    k = filter_size - 2
    ho = (h + 2 * pad - k) // stride + 1
    wo = (w + 2 * pad - k) // stride + 1
    planes = n * c
    itemsize = jnp.dtype(x_nchw.dtype).itemsize

    taps = _hann_taps(filter_size)
    v_mat = _conv_matrix(h, ho, taps, stride, pad)     # (H, Ho) vertical
    h_mat = _conv_matrix(w, wo, taps, stride, pad)     # (W, Wo) horizontal

    vmem_cap = _vmem_capacity_bytes()
    flops_sq = planes * h * w
    transcendentals = planes * ho * wo
    io_bytes = planes * (h * w + ho * wo) * itemsize

    kron_bytes = h * w * ho * wo * 4
    use_kron = (not force_separable) and kron_bytes <= _KRON_MATRIX_BUDGET

    if use_kron:
        # ---------------- fused single-matmul path (small feature maps) ------
        m2d = jnp.kron(v_mat, h_mat)                   # (H*W, Ho*Wo)
        x2d = x_nchw.reshape(planes, h * w)            # free reshape
        row_in = _round_up(h * w, _LANE) * 4
        row_out = _round_up(ho * wo, _LANE) * 4
        tp = _pick_tp_kron(planes, row_in, vmem_cap)
        grid = (pl.cdiv(planes, tp),)

        blk_rows = _round_up(tp, _SUBLANE)
        m2d_bytes = _round_up(h * w, _SUBLANE) * _round_up(ho * wo, _LANE) * 4
        est_vmem = (3 * blk_rows * row_in              # 2x in blocks + squared temp
                    + 3 * blk_rows * row_out           # 2x out blocks + pre-sqrt temp
                    + 2 * m2d_bytes                    # resident conv matrix (+ slack)
                    + (4 << 20))                       # compiler scratch margin
        vmem_limit = int(min(int(0.9 * vmem_cap), max(32 << 20, est_vmem)))

        cost = pl.CostEstimate(
            flops=int(2 * planes * (h * w) * (ho * wo) + flops_sq),
            transcendentals=int(transcendentals),
            bytes_accessed=int(io_bytes + h * w * ho * wo * 4),
        )

        out2d = pl.pallas_call(
            _l2pool_kron_kernel,
            out_shape=jax.ShapeDtypeStruct((planes, ho * wo), x_nchw.dtype),
            grid=grid,
            in_specs=[
                pl.BlockSpec((tp, h * w), lambda i: (i, 0)),
                pl.BlockSpec((h * w, ho * wo), lambda i: (0, 0)),
            ],
            out_specs=pl.BlockSpec((tp, ho * wo), lambda i: (i, 0)),
            compiler_params=pltpu.CompilerParams(
                dimension_semantics=("parallel",),
                vmem_limit_bytes=vmem_limit),
            cost_estimate=cost,
        )(x2d, m2d)
        return out2d.reshape(n, c, ho, wo)

    # ---------------- separable two-matmul path (large feature maps) ---------
    mw = h_mat                                         # (W, Wo)
    mh = v_mat.T                                       # (Ho, H)
    x2d = x_nchw.reshape(planes * h, w)                # free reshape
    plane_in = h * _round_up(w, _LANE) * 4
    plane_out = ho * _round_up(wo, _LANE) * 4
    plane_t = h * _round_up(wo, _LANE) * 4
    tp = _pick_tp_sep(planes, h, ho, plane_in, vmem_cap)
    grid = (pl.cdiv(planes, tp),)

    const_bytes = (_round_up(w, _SUBLANE) * _round_up(wo, _LANE)
                   + _round_up(ho, _SUBLANE) * _round_up(h, _LANE)) * 4
    est_vmem = (3 * tp * plane_in                      # 2x in blocks + squared temp
                + 3 * tp * plane_out                   # 2x out blocks + pre-sqrt temp
                + tp * plane_t                         # VMEM scratch intermediate
                + 2 * const_bytes
                + (4 << 20))
    vmem_limit = int(min(int(0.9 * vmem_cap), max(32 << 20, est_vmem)))

    cost = pl.CostEstimate(
        flops=int(2 * planes * wo * (h * w + ho * h) + flops_sq),
        transcendentals=int(transcendentals),
        bytes_accessed=int(io_bytes + const_bytes),
    )

    out2d = pl.pallas_call(
        _l2pool_sep_kernel,
        out_shape=jax.ShapeDtypeStruct((planes * ho, wo), x_nchw.dtype),
        grid=grid,
        in_specs=[
            pl.BlockSpec((tp * h, w), lambda i: (i, 0)),
            pl.BlockSpec((w, wo), lambda i: (0, 0)),
            pl.BlockSpec((ho, h), lambda i: (0, 0)),
        ],
        out_specs=pl.BlockSpec((tp * ho, wo), lambda i: (i, 0)),
        scratch_shapes=[pltpu.VMEM((tp * h, wo), jnp.float32)],
        compiler_params=pltpu.CompilerParams(
            dimension_semantics=("parallel",),
            vmem_limit_bytes=vmem_limit),
        cost_estimate=cost,
    )(x2d, mw, mh)
    return out2d.reshape(n, c, ho, wo)


# ----------------------------- reference --------------------------------------

def _make_hann_filter(channels, filter_size=FILTER_SIZE, dtype=jnp.float32):
    """Filter buffer exactly as built in the PyTorch __init__ (shape (C, 1, 3, 3))."""
    n = jnp.arange(filter_size, dtype=jnp.float32)
    hann = 0.5 - 0.5 * jnp.cos(2.0 * jnp.pi * n / (filter_size - 1))
    a = hann[1:-1]
    g = a[:, None] * a[None, :]
    g = g / jnp.sum(g)
    kk = filter_size - 2
    return jnp.broadcast_to(g[None, None], (channels, 1, kk, kk)).astype(dtype)


def _reference(x_nchw, filt_oihw, stride=STRIDE, filter_size=FILTER_SIZE):
    """Pure-JAX reference identical to the PyTorch forward."""
    c = x_nchw.shape[1]
    pad = (filter_size - 2) // 2
    out = jax.lax.conv_general_dilated(
        x_nchw ** 2, filt_oihw,
        window_strides=(stride, stride),
        padding=[(pad, pad), (pad, pad)],
        dimension_numbers=("NCHW", "OIHW", "NCHW"),
        feature_group_count=c,
    )
    return jnp.sqrt(out + 1e-12)


if __name__ == "__main__":
    key = jax.random.PRNGKey(0)
    N, C, H, W = 2, 4, 16, 16
    x = jax.random.normal(key, (N, C, H, W), dtype=jnp.float32)

    y_ref = _reference(x, _make_hann_filter(C))

    # Small feature maps take the fused single-matmul ("kron") path.
    y = jax.block_until_ready(l2pooling(x))
    # Also exercise the separable two-matmul path used for large feature maps.
    y_sep = jax.block_until_ready(l2pooling(x, force_separable=True))

    pad = (FILTER_SIZE - 2) // 2
    k = FILTER_SIZE - 2
    Ho = (H + 2 * pad - k) // STRIDE + 1
    Wo = (W + 2 * pad - k) // STRIDE + 1
    assert y.shape == (N, C, Ho, Wo)
    assert y_sep.shape == (N, C, Ho, Wo)
    assert jnp.allclose(y, y_ref, atol=1e-5, rtol=1e-5), "kron path mismatch vs reference"
    assert jnp.allclose(y_sep, y_ref, atol=1e-5, rtol=1e-5), "separable path mismatch vs reference"

    print("KERNEL_OK")
</pallas_src>

<mosaic_0001>
module attributes {stable_mosaic.version = 11 : i64} {
  func.func @_l2pool_kron_kernel(%arg0: i32, %arg1: memref<8x256xf32, #tpu.memory_space<vmem>>, %arg2: memref<256x64xf32, #tpu.memory_space<vmem>>, %arg3: memref<8x64xf32, #tpu.memory_space<vmem>>) attributes {dimension_semantics = [#tpu.dimension_semantics<parallel>], iteration_bounds = array<i64: 1>, scalar_prefetch = 0 : i64, scratch_operands = 0 : i64, tpu.core_type = #tpu.core_type<tc>, window_params = [{transform_indices = @transform_0, window_bounds = array<i64: 8, 256>}, {pipeline_mode = #tpu.pipeline_mode<synchronous>, transform_indices = @transform_1, window_bounds = array<i64: 256, 64>}, {transform_indices = @transform_2, window_bounds = array<i64: 8, 64>}]} {
    %c0 = arith.constant 0 : index
    %c0_0 = arith.constant 0 : index
    %0 = vector.load %arg1[%c0, %c0_0] : memref<8x256xf32, #tpu.memory_space<vmem>>, vector<8x256xf32>
    %1 = arith.mulf %0, %0 : vector<8x256xf32>
    %c0_1 = arith.constant 0 : index
    %c0_2 = arith.constant 0 : index
    %2 = vector.load %arg2[%c0_1, %c0_2] : memref<256x64xf32, #tpu.memory_space<vmem>>, vector<256x64xf32>
    %cst = arith.constant dense<0.000000e+00> : vector<8x64xf32>
    %3 = tpu.matmul %1, %2, %cst {dimension_numbers = #tpu.dot_dimension_numbers<[1], [0], [0], [1], [0, 0, 1, 1], [], []>} : vector<8x256xf32>, vector<256x64xf32>, vector<8x64xf32> -> vector<8x64xf32>
    %cst_3 = arith.constant 9.99999996E-13 : f32
    %4 = vector.broadcast %cst_3 : f32 to vector<8x64xf32>
    %5 = arith.addf %3, %4 : vector<8x64xf32>
    %6 = math.sqrt %5 : vector<8x64xf32>
    %c0_4 = arith.constant 0 : index
    %c0_5 = arith.constant 0 : index
    %7 = vector.load %arg3[%c0_4, %c0_5] : memref<8x64xf32, #tpu.memory_space<vmem>>, vector<8x64xf32>
    tpu.vector_store %arg3[%c0_4, %c0_5], %6 {strides = array<i32>} : memref<8x64xf32, #tpu.memory_space<vmem>>, vector<8x64xf32>,
    return
  }
  func.func @transform_0(%arg0: i32) -> (i32, i32) {
    %c0_i32 = arith.constant 0 : i32
    %c0_i32_0 = arith.constant 0 : i32
    return %arg0, %c0_i32 : i32, i32
  }
  func.func @transform_1(%arg0: i32) -> (i32, i32) {
    %c0_i32 = arith.constant 0 : i32
    %c0_i32_0 = arith.constant 0 : i32
    %c0_i32_1 = arith.constant 0 : i32
    return %c0_i32, %c0_i32_0 : i32, i32
  }
  func.func @transform_2(%arg0: i32) -> (i32, i32) {
    %c0_i32 = arith.constant 0 : i32
    %c0_i32_0 = arith.constant 0 : i32
    return %arg0, %c0_i32 : i32, i32
  }
}

</mosaic_0001>

<llo_original>
// kernel: tpu_custom_call.1
$region0: #{tpu_custom_call.1}
  #allocation0 [shape = 'u32[]', space=smem, size = 0x4, offset = 0x4, fixed_abs, tag = 'smem constant byte address 0x4 - core index']
  #allocation1 [shape = 'u32[144,128]{1,0:T(1,128)}', space=vmem, size = 0x12000, scoped, tag = 'internal scratch']
  %s0 = inlined_call_operand.vmem [shape: f32[8,256], index: 0, kind: input, shape index: {}]
  %s1 = inlined_call_operand.vmem [shape: f32[256,64], index: 1, kind: input, shape index: {}]
  %s2 = inlined_call_operand.hbm [shape: f32[8,64], index: 2, kind: output, shape index: {}]
  %s3 = sld [smem:[#allocation0]]
  $region18: #{tpu_custom_call.1} parent=0
    _
  %s5 = ssub.s32 1, %s3
  %s6 = scalar_select 0, %s5, %s3
  $region1: #{tpu_custom_call.1} parent=0
    #allocation2 [shape = 'u8[4096]{0}', space=vmem, size = 0x1000, scoped, tag = 'output window, operand 0, single buffered']
    #allocation3 [shape = 's32[1]{0}', space=sflag, size = 0x4, scoped, tag = 'scoped memory for tpu_custom_call.1']
    %7 = vsyncpa [#allocation3], 0
    // Predicated region
    $region2: #{tpu_custom_call.1} parent=1 // pred_check
      _
    $region3: #{tpu_custom_call.1} parent=1 // pred_check_branch
      %9 = sbr.rel (0) target = $region5
    $region4: #{tpu_custom_call.1} parent=1 // pred_region
      _
    $region5: #{tpu_custom_call.1} parent=1 // pred_fallthru
      _
    // Predicated region
    $region6: #{tpu_custom_call.1} parent=1 // pred_check
      _
    $region7: #{tpu_custom_call.1} parent=1 // pred_check_branch
      %11 = sbr.rel (0) target = $region9
    $region8: #{tpu_custom_call.1} parent=1 // pred_region
      _
    $region9: #{tpu_custom_call.1} parent=1 // pred_fallthru
      _
    %v12 = vld [vmem:[%s0] sm:$0xff]
    %v13 = vld [vmem:[%s0 + $0x8] sm:$0xff]
    %v14 = vmul.f32 %v12, %v12
    %v15 = vmul.f32 %v13, %v13
    %v16 = vld [vmem:[%s1] sm:$0xff]
    %v17 = vld [vmem:[%s1 + $0x8] sm:$0xff]
    %v18 = vld [vmem:[%s1 + $0x10] sm:$0xff]
    %v19 = vld [vmem:[%s1 + $0x18] sm:$0xff]
    %v20 = vld [vmem:[%s1 + $0x20] sm:$0xff]
    %v21 = vld [vmem:[%s1 + $0x28] sm:$0xff]
    %v22 = vld [vmem:[%s1 + $0x30] sm:$0xff]
    %v23 = vld [vmem:[%s1 + $0x38] sm:$0xff]
    %v24 = vld [vmem:[%s1 + $0x40] sm:$0xff]
    %v25 = vld [vmem:[%s1 + $0x48] sm:$0xff]
    %v26 = vld [vmem:[%s1 + $0x50] sm:$0xff]
    %v27 = vld [vmem:[%s1 + $0x58] sm:$0xff]
    %v28 = vld [vmem:[%s1 + $0x60] sm:$0xff]
    %v29 = vld [vmem:[%s1 + $0x68] sm:$0xff]
    %v30 = vld [vmem:[%s1 + $0x70] sm:$0xff]
    %v31 = vld [vmem:[%s1 + $0x78] sm:$0xff]
    %v32 = vld [vmem:[%s1 + $0x80] sm:$0xff]
    %v33 = vld [vmem:[%s1 + $0x88] sm:$0xff]
    %v34 = vld [vmem:[%s1 + $0x90] sm:$0xff]
    %v35 = vld [vmem:[%s1 + $0x98] sm:$0xff]
    %v36 = vld [vmem:[%s1 + $0xa0] sm:$0xff]
    %v37 = vld [vmem:[%s1 + $0xa8] sm:$0xff]
    %v38 = vld [vmem:[%s1 + $0xb0] sm:$0xff]
    %v39 = vld [vmem:[%s1 + $0xb8] sm:$0xff]
    %v40 = vld [vmem:[%s1 + $0xc0] sm:$0xff]
    %v41 = vld [vmem:[%s1 + $0xc8] sm:$0xff]
    %v42 = vld [vmem:[%s1 + $0xd0] sm:$0xff]
    %v43 = vld [vmem:[%s1 + $0xd8] sm:$0xff]
    %v44 = vld [vmem:[%s1 + $0xe0] sm:$0xff]
    %v45 = vld [vmem:[%s1 + $0xe8] sm:$0xff]
    %v46 = vld [vmem:[%s1 + $0xf0] sm:$0xff]
    %v47 = vld [vmem:[%s1 + $0xf8] sm:$0xff]
    %48 = vmatprep.subr.mxu0 0.0
    %49 = vmatpush1.msra.mxu0 %v31
    %50 = vmatprep.subr.mxu0 0.0
    %51 = vmatpush1.msra.mxu0 %v30
    %52 = vmatprep.subr.mxu0 0.0
    %53 = vmatpush1.msra.mxu0 %v29
    %54 = vmatprep.subr.mxu0 0.0
    %55 = vmatpush1.msra.mxu0 %v28
    %56 = vmatprep.subr.mxu0 0.0
    %57 = vmatpush1.msra.mxu0 %v27
    %58 = vmatprep.subr.mxu0 0.0
    %59 = vmatpush1.msra.mxu0 %v26
    %60 = vmatprep.subr.mxu0 0.0
    %61 = vmatpush1.msra.mxu0 %v25
    %62 = vmatprep.subr.mxu0 0.0
    %63 = vmatpush1.msra.mxu0 %v24
    %64 = vmatprep.subr.mxu0 0.0
    %65 = vmatpush1.msra.mxu0 %v23
    %66 = vmatprep.subr.mxu0 0.0
    %67 = vmatpush1.msra.mxu0 %v22
    %68 = vmatprep.subr.mxu0 0.0
    %69 = vmatpush1.msra.mxu0 %v21
    %70 = vmatprep.subr.mxu0 0.0
    %71 = vmatpush1.msra.mxu0 %v20
    %72 = vmatprep.subr.mxu0 0.0
    %73 = vmatpush1.msra.mxu0 %v19
    %74 = vmatprep.subr.mxu0 0.0
    %75 = vmatpush1.msra.mxu0 %v18
    %76 = vmatprep.subr.mxu0 0.0
    %77 = vmatpush1.msra.mxu0 %v17
    %78 = vmatprep.subr.mxu0 0.0
    %79 = vmatpush1.msra.mxu0 %v16
    %80 = vmatprep.subr.mxu0 0.0
    %81 = vmatpush2.msra.mxu0 %v47
    %82 = vmatprep.subr.mxu0 0.0
    %83 = vmatpush2.msra.mxu0 %v46
    %84 = vmatprep.subr.mxu0 0.0
    %85 = vmatpush2.msra.mxu0 %v45
    %86 = vmatprep.subr.mxu0 0.0
    %87 = vmatpush2.msra.mxu0 %v44
    %88 = vmatprep.subr.mxu0 0.0
    %89 = vmatpush2.msra.mxu0 %v43
    %90 = vmatprep.subr.mxu0 0.0
    %91 = vmatpush2.msra.mxu0 %v42
    %92 = vmatprep.subr.mxu0 0.0
    %93 = vmatpush2.msra.mxu0 %v41
    %94 = vmatprep.subr.mxu0 0.0
    %95 = vmatpush2.msra.mxu0 %v40
    %96 = vmatprep.subr.mxu0 0.0
    %97 = vmatpush2.msra.mxu0 %v39
    %98 = vmatprep.subr.mxu0 0.0
    %99 = vmatpush2.msra.mxu0 %v38
    %100 = vmatprep.subr.mxu0 0.0
    %101 = vmatpush2.msra.mxu0 %v37
    %102 = vmatprep.subr.mxu0 0.0
    %103 = vmatpush2.msra.mxu0 %v36
    %104 = vmatprep.subr.mxu0 0.0
    %105 = vmatpush2.msra.mxu0 %v35
    %106 = vmatprep.subr.mxu0 0.0
    %107 = vmatpush2.msra.mxu0 %v34
    %108 = vmatprep.subr.mxu0 0.0
    %109 = vmatpush2.msra.mxu0 %v33
    %110 = vmatprep.subr.mxu0 0.0
    %111 = vmatpush2.msra.mxu0 %v32
    %112 = vmatprep.mubr.f32.mxu0 %v15
    %113 = vmatmul.mubr.f32.gmra.mxu0 %v14
    %v114 = vpop.f32.mrf.mxu0
    %v115 = vadd.f32 1e-12, %v114
    %v116 = vpop.f32.mrf.mxu0
    %117 = vdwg.mxu0
    %v118 = vrsqrt.pop %v115
    %v119 = vmul.f32 %v115, %v118
    %vm120 = vcmp.eq.f32.partialorder %v115, inf
    %v121 = vsel %vm120, %v115, %v119
    %vm122 = vcmp.eq.f32.partialorder %v115, 0.0
    %v123 = vand.u32 %v115, 2147483648
    %v124 = vsel %vm122, %v123, %v121
    %vm125 = vcmask 523264
    %126 = vst.msk [vmem:[#allocation2] sm:$0xff] %vm125, %v124
    // Predicated region
    $region10: #{tpu_custom_call.1} parent=1 // pred_check
      _
    $region11: #{tpu_custom_call.1} parent=1 // pred_check_branch
      %128 = sbr.rel (0) target = $region13
    $region12: #{tpu_custom_call.1} parent=1 // pred_region
      %s130 = ssub.s32 128, 128
      %131 = vsyncadd [#allocation3], %s130
      %s133 = sshll.u32 [#allocation2], 4
      %s134 = int_to_ptr.vmem [resolvable:$true] %s133
      %136 = dma.vmem_to_hbm [thread:$0]  %s134, 128, %s2, [#allocation3]
    $region13: #{tpu_custom_call.1} parent=1 // pred_fallthru
      _
    // Predicated region
    $region14: #{tpu_custom_call.1} parent=1 // pred_check
      _
    $region15: #{tpu_custom_call.1} parent=1 // pred_check_branch
      %138 = sbr.rel (0) target = $region17
    $region16: #{tpu_custom_call.1} parent=1 // pred_region
      %139 = dma.done [#allocation3], 128
    $region17: #{tpu_custom_call.1} parent=1 // pred_fallthru
      _
    %140 = vsyncpa [#allocation3], 1

</llo_original>
